<compile_context>
chip_gen: v7x
topology: tpu7x:2x2x1
jax: 0.10.0
libtpu: 0.0.40
codegen_flags: <defaults>
</compile_context>

<pallas_src>
import functools

import jax
import jax.numpy as jnp
from jax.experimental import pallas as pl
from jax.experimental.pallas import tpu as pltpu


def _randperm_kernel(perm_ref, x_ref, o_ref, *, tk):
    # perm_ref: (1, tn) int32  -- permutation indices for this output-col tile
    # x_ref   : (tm, n_pad)    -- full row panel, resident in VMEM across (j, k)
    # o_ref   : (tm, tn)       -- output tile, accumulated directly across k
    k = pl.program_id(2)
    start = pl.multiple_of(k * tk, tk)

    x_chunk = x_ref[:, pl.ds(start, tk)]                    # (tm, tk)
    shifted = perm_ref[...] - start                         # (1, tn) tiny VALU op
    rows = jax.lax.broadcasted_iota(jnp.int32, (tk, perm_ref.shape[1]), 0)
    # P[r, c] = 1 iff (k*tk + r) == perm[c]; 0/1 is exact in bf16/f32, so bf16
    # inputs take the fast bf16 MXU path with bit-exact results.
    p_mat = (rows == shifted).astype(x_chunk.dtype)         # (tk, tn)
    # out[b, c] = sum_r x[b, r] * P[r, c] = x[b, perm[c]]
    contrib = jnp.dot(x_chunk, p_mat,
                      preferred_element_type=jnp.float32).astype(o_ref.dtype)

    @pl.when(k == 0)
    def _first():
        o_ref[...] = contrib

    @pl.when(k > 0)
    def _rest():
        # Exact even in bf16: each output element receives exactly one nonzero
        # contribution across the k axis (all other terms are exact zeros).
        o_ref[...] += contrib


def _round_up(a, m):
    return ((a + m - 1) // m) * m


def rand_perm_forward(x: jax.Array, key: jax.Array) -> jax.Array:
    """Pallas implementation of RandPerm.forward: x[:, randperm(x.shape[-1])]."""
    assert x.ndim == 2
    b, n = x.shape
    orig_dtype = x.dtype
    if not jnp.issubdtype(orig_dtype, jnp.floating):
        # TODO(synk): exact integer path via DMA gather; f32 matmul is lossy >2^24.
        raise NotImplementedError("rand_perm_forward only supports float dtypes")

    itemsize = jnp.dtype(orig_dtype).itemsize

    # torch.randperm draws a fresh permutation per call; here the permutation is
    # a deterministic function of `key` (callers vary the key per invocation).
    perm = jax.random.permutation(key, n).astype(jnp.int32)

    # ---- Column tiling: largest of {512, 256, 128} that divides n_pad.
    n_pad = _round_up(n, 128)
    tn = 128
    for cand in (512, 256):
        if n_pad % cand == 0:
            tn = cand
            break
    tk = tn

    # ---- Row tiling: a single resident panel for small batches (amortizes the
    # one-hot build over every row); otherwise the largest tile whose panel fits
    # the per-buffer VMEM budget (keeps double-buffering intact on v7x's 64 MiB).
    row_align = 16 if itemsize == 2 else 8
    panel_budget = 12 * 1024 * 1024  # bytes per x-panel buffer
    small_tm = _round_up(b, row_align)
    if b <= 512 and small_tm * n_pad * itemsize <= panel_budget:
        tm = small_tm
    else:
        tm = row_align
        for cand in (512, 256, 128, 64, 32, 16, 8):
            if cand % row_align == 0 and cand * n_pad * itemsize <= panel_budget:
                tm = cand
                break
    b_pad = _round_up(b, tm)

    # ---- Padding only for ragged shapes; aligned inputs take a zero-copy path.
    if (b_pad, n_pad) != (b, n):
        # Zero-fill so out-of-range input columns can never inject NaN/Inf
        # through garbage*0 in the matmul.
        x = jnp.pad(x, ((0, b_pad - b), (0, n_pad - n)))
    if n_pad != n:
        # Padded output columns get index -1 -> never match any row -> zeros
        # (cropped below); padded input columns are never selected either.
        perm = jnp.pad(perm, (0, n_pad - n), constant_values=-1)
    perm2 = perm.reshape(1, n_pad)

    grid = (b_pad // tm, n_pad // tn, n_pad // tk)

    # ---- VMEM budget: x panel (2 bufs) + out tile (2 bufs) + perm + temps.
    vmem_needed = (2 * tm * n_pad * itemsize
                   + 2 * tm * tn * itemsize
                   + 2 * n_pad * 4
                   + 4 * tk * tn * max(itemsize, 4))
    vmem_limit = int(min(max(32 * 1024 * 1024, vmem_needed + (2 << 20)),
                         48 * 1024 * 1024))

    # HBM traffic: x read once, out written once, perm re-read once per row panel.
    cost = pl.CostEstimate(
        flops=2 * b_pad * n_pad * n_pad,
        transcendentals=0,
        bytes_accessed=(b_pad * n_pad * itemsize          # x, exactly 1x
                        + b_pad * n_pad * itemsize        # out, 1x
                        + (b_pad // tm) * n_pad * 4),     # perm
    )

    out = pl.pallas_call(
        functools.partial(_randperm_kernel, tk=tk),
        out_shape=jax.ShapeDtypeStruct((b_pad, n_pad), orig_dtype),
        grid_spec=pltpu.PrefetchScalarGridSpec(
            num_scalar_prefetch=0,
            grid=grid,
            in_specs=[
                # Permutation slice for this output-column tile.
                pl.BlockSpec((1, tn), lambda i, j, k: (0, j)),
                # Full row panel: block index depends only on i, so it stays
                # resident in VMEM across j and k (one HBM read per row panel).
                pl.BlockSpec((tm, n_pad), lambda i, j, k: (i, 0)),
            ],
            out_specs=pl.BlockSpec((tm, tn), lambda i, j, k: (i, j)),
        ),
        compiler_params=pltpu.CompilerParams(
            dimension_semantics=("parallel", "parallel", "arbitrary"),
            vmem_limit_bytes=vmem_limit,
        ),
        cost_estimate=cost,
    )(perm2, x)

    if (b_pad, n_pad) != (b, n):
        out = out[:b, :n]
    return out


if __name__ == "__main__":
    key = jax.random.PRNGKey(0)
    k_x, k_perm, k_x2, k_perm2, k_x3, k_perm3 = jax.random.split(key, 6)

    # Case 1: f32, fully aligned (B=8, N=128) -> no pad, single grid step.
    B, N = 8, 128
    x = jax.random.normal(k_x, (B, N), dtype=jnp.float32)
    out = jax.block_until_ready(rand_perm_forward(x, k_perm))
    ref = x[:, jax.random.permutation(k_perm, N)]
    assert out.shape == x.shape and out.dtype == x.dtype
    assert jnp.array_equal(out, ref), "f32 mismatch vs reference permutation"

    # Case 2: bf16, ragged rows+cols (B=6, N=192 -> 16x256 internally, padded path).
    B2, N2 = 6, 192
    x2 = jax.random.normal(k_x2, (B2, N2), dtype=jnp.float32).astype(jnp.bfloat16)
    out2 = jax.block_until_ready(rand_perm_forward(x2, k_perm2))
    ref2 = x2[:, jax.random.permutation(k_perm2, N2)]
    assert out2.shape == x2.shape and out2.dtype == x2.dtype
    assert bool(jnp.all(out2 == ref2)), "bf16 mismatch vs reference permutation"

    # Case 3: f32, multi-tile grid (B=64, N=1024 -> tn=tk=512, grid (1,2,2)),
    # exercises the resident-panel reuse and in-place o_ref accumulation.
    B3, N3 = 64, 1024
    x3 = jax.random.normal(k_x3, (B3, N3), dtype=jnp.float32)
    out3 = jax.block_until_ready(rand_perm_forward(x3, k_perm3))
    ref3 = x3[:, jax.random.permutation(k_perm3, N3)]
    assert out3.shape == x3.shape and out3.dtype == x3.dtype
    assert jnp.array_equal(out3, ref3), "f32 multi-tile mismatch vs reference"

    print("KERNEL_OK")
</pallas_src>

<mosaic_0001>
module attributes {stable_mosaic.version = 11 : i64} {
  func.func @_randperm_kernel(%arg0: i32, %arg1: i32, %arg2: i32, %arg3: memref<1x128xi32, #tpu.memory_space<vmem>>, %arg4: memref<8x128xf32, #tpu.memory_space<vmem>>, %arg5: memref<8x128xf32, #tpu.memory_space<vmem>>) attributes {dimension_semantics = [#tpu.dimension_semantics<parallel>, #tpu.dimension_semantics<parallel>, #tpu.dimension_semantics<arbitrary>], iteration_bounds = array<i64: 1, 1, 1>, scalar_prefetch = 0 : i64, scratch_operands = 0 : i64, tpu.core_type = #tpu.core_type<tc>, window_params = [{transform_indices = @transform_0, window_bounds = array<i64: 1, 128>}, {transform_indices = @transform_1, window_bounds = array<i64: 8, 128>}, {transform_indices = @transform_2, window_bounds = array<i64: 8, 128>}]} {
    %c128_i32 = arith.constant 128 : i32
    %0 = arith.muli %arg2, %c128_i32 : i32
    %1 = tpu.assume_multiple %0, 128 : i32
    %c0 = arith.constant 0 : index
    %2 = arith.index_cast %1 : i32 to index
    %3 = vector.load %arg4[%c0, %2] : memref<8x128xf32, #tpu.memory_space<vmem>>, vector<8x128xf32>
    %c0_0 = arith.constant 0 : index
    %c0_1 = arith.constant 0 : index
    %4 = vector.load %arg3[%c0_0, %c0_1] : memref<1x128xi32, #tpu.memory_space<vmem>>, vector<1x128xi32>
    %5 = vector.broadcast %1 : i32 to vector<1x128xi32>
    %6 = arith.subi %4, %5 : vector<1x128xi32>
    %7 = tpu.iota {dimensions = array<i32: 0>} : vector<128x128xi32>
    %8 = vector.broadcast %6 : vector<1x128xi32> to vector<128x128xi32>
    %9 = arith.cmpi eq, %7, %8 : vector<128x128xi32>
    %10 = arith.extui %9 : vector<128x128xi1> to vector<128x128xi32>
    %11 = arith.sitofp %10 : vector<128x128xi32> to vector<128x128xf32>
    %cst = arith.constant dense<0.000000e+00> : vector<8x128xf32>
    %12 = tpu.matmul %3, %11, %cst {dimension_numbers = #tpu.dot_dimension_numbers<[1], [0], [0], [1], [0, 0, 1, 1], [], []>} : vector<8x128xf32>, vector<128x128xf32>, vector<8x128xf32> -> vector<8x128xf32>
    %c0_i32 = arith.constant 0 : i32
    %13 = arith.cmpi eq, %arg2, %c0_i32 : i32
    %14 = arith.extui %13 : i1 to i32
    %c0_i32_2 = arith.constant 0 : i32
    %15 = arith.cmpi ne, %14, %c0_i32_2 : i32
    scf.if %15 {
      %c0_5 = arith.constant 0 : index
      %c0_6 = arith.constant 0 : index
      %19 = vector.load %arg5[%c0_5, %c0_6] : memref<8x128xf32, #tpu.memory_space<vmem>>, vector<8x128xf32>
      tpu.vector_store %arg5[%c0_5, %c0_6], %12 {strides = array<i32>} : memref<8x128xf32, #tpu.memory_space<vmem>>, vector<8x128xf32>,
    } else {
    }
    %c0_i32_3 = arith.constant 0 : i32
    %16 = arith.cmpi sgt, %arg2, %c0_i32_3 : i32
    %17 = arith.extui %16 : i1 to i32
    %c0_i32_4 = arith.constant 0 : i32
    %18 = arith.cmpi ne, %17, %c0_i32_4 : i32
    scf.if %18 {
      %c0_5 = arith.constant 0 : index
      %c0_6 = arith.constant 0 : index
      %19 = vector.load %arg5[%c0_5, %c0_6] : memref<8x128xf32, #tpu.memory_space<vmem>>, vector<8x128xf32>
      %20 = arith.addf %19, %12 : vector<8x128xf32>
      %c0_7 = arith.constant 0 : index
      %c0_8 = arith.constant 0 : index
      %21 = vector.load %arg5[%c0_7, %c0_8] : memref<8x128xf32, #tpu.memory_space<vmem>>, vector<8x128xf32>
      tpu.vector_store %arg5[%c0_7, %c0_8], %20 {strides = array<i32>} : memref<8x128xf32, #tpu.memory_space<vmem>>, vector<8x128xf32>,
    } else {
    }
    return
  }
  func.func @transform_0(%arg0: i32, %arg1: i32, %arg2: i32) -> (i32, i32) {
    %c0_i32 = arith.constant 0 : i32
    %c0_i32_0 = arith.constant 0 : i32
    return %c0_i32, %arg1 : i32, i32
  }
  func.func @transform_1(%arg0: i32, %arg1: i32, %arg2: i32) -> (i32, i32) {
    %c0_i32 = arith.constant 0 : i32
    %c0_i32_0 = arith.constant 0 : i32
    return %arg0, %c0_i32 : i32, i32
  }
  func.func @transform_2(%arg0: i32, %arg1: i32, %arg2: i32) -> (i32, i32) {
    %c0_i32 = arith.constant 0 : i32
    return %arg0, %arg1 : i32, i32
  }
}

</mosaic_0001>

<llo_original>
// kernel: tpu_custom_call.1
$region0: #{tpu_custom_call.1}
  #allocation0 [shape = 'u32[]', space=smem, size = 0x4, offset = 0x4, fixed_abs, tag = 'smem constant byte address 0x4 - core index']
  #allocation1 [shape = 'u32[144,128]{1,0:T(1,128)}', space=vmem, size = 0x12000, scoped, tag = 'internal scratch']
  %s0 = inlined_call_operand.hbm [shape: s32[1,128], index: 0, kind: input, shape index: {}]
  %s1 = inlined_call_operand.hbm [shape: f32[8,128], index: 1, kind: input, shape index: {}]
  %s2 = inlined_call_operand.hbm [shape: f32[8,128], index: 2, kind: output, shape index: {}]
  %s3 = sld [smem:[#allocation0]]
  $region34: #{tpu_custom_call.1} parent=0
    _
  %s5 = ssub.s32 1, %s3
  %s6 = scalar_select 0, %s5, %s3
  $region1: #{tpu_custom_call.1} parent=0
    #allocation2 [shape = 'u8[512]{0}', space=vmem, size = 0x400, scoped, tag = 'input window, operand 0, single buffered']
    #allocation3 [shape = 's32[1]{0}', space=sflag, size = 0x4, scoped, tag = 'scoped memory for tpu_custom_call.1']
    #allocation4 [shape = 's32[1]{0}', space=sflag, size = 0x4, scoped, tag = 'scoped memory for tpu_custom_call.1']
    #allocation5 [shape = 'u8[4096]{0}', space=vmem, size = 0x1000, scoped, tag = 'input window, operand 1, single buffered']
    #allocation6 [shape = 's32[1]{0}', space=sflag, size = 0x4, scoped, tag = 'scoped memory for tpu_custom_call.1']
    #allocation7 [shape = 'u8[4096]{0}', space=vmem, size = 0x1000, scoped, tag = 'output window, operand 0, single buffered']
    %7 = vsyncpa [#allocation3], 0
    %8 = vsyncpa [#allocation6], 0
    %9 = vsyncpa [#allocation4], 0
    // Predicated region
    $region2: #{tpu_custom_call.1} parent=1 // pred_check
      _
    $region3: #{tpu_custom_call.1} parent=1 // pred_check_branch
      %11 = sbr.rel (0) target = $region5
    $region4: #{tpu_custom_call.1} parent=1 // pred_region
      %s13 = ssub.s32 16, 16
      %14 = vsyncadd [#allocation3], %s13
      %s16 = sshll.u32 [#allocation2], 4
      %s17 = int_to_ptr.vmem [resolvable:$true] %s16
      %19 = dma.hbm_to_vmem [thread:$0]  %s0, 16, %s17, [#allocation3]
    $region5: #{tpu_custom_call.1} parent=1 // pred_fallthru
      _
    // Predicated region
    $region6: #{tpu_custom_call.1} parent=1 // pred_check
      _
    $region7: #{tpu_custom_call.1} parent=1 // pred_check_branch
      %21 = sbr.rel (0) target = $region9
    $region8: #{tpu_custom_call.1} parent=1 // pred_region
      %s23 = ssub.s32 128, 128
      %24 = vsyncadd [#allocation6], %s23
      %s26 = sshll.u32 [#allocation5], 4
      %s27 = int_to_ptr.vmem [resolvable:$true] %s26
      %29 = dma.hbm_to_vmem [thread:$0]  %s1, 128, %s27, [#allocation6]
    $region9: #{tpu_custom_call.1} parent=1 // pred_fallthru
      _
    // Predicated region
    $region10: #{tpu_custom_call.1} parent=1 // pred_check
      _
    $region11: #{tpu_custom_call.1} parent=1 // pred_check_branch
      %31 = sbr.rel (0) target = $region13
    $region12: #{tpu_custom_call.1} parent=1 // pred_region
      %32 = dma.done [#allocation3], 16
    $region13: #{tpu_custom_call.1} parent=1 // pred_fallthru
      _
    // Predicated region
    $region14: #{tpu_custom_call.1} parent=1 // pred_check
      _
    $region15: #{tpu_custom_call.1} parent=1 // pred_check_branch
      %34 = sbr.rel (0) target = $region17
    $region16: #{tpu_custom_call.1} parent=1 // pred_region
      %35 = dma.done [#allocation6], 128
    $region17: #{tpu_custom_call.1} parent=1 // pred_fallthru
      _
    %s36 = smul.u32 0, 128
    %s37 = sshra.s32 %s36, 7
    %s38 = sand.u32 %s36, 127
    %s39 = scalar_lea.vmem [#allocation5], %s37
    %v40 = vld [vmem:[%s39] sm:$0xff]
    %v41 = vld [vmem:[#allocation2] sm:$0x1]
    %v42 = vstv %s36
    %v43 = vsub.s32 %v41, %v42
    %v44 = vlaneseq
    %v45 = vshrl.u32 %v44, 7
    %v46 = vadd.s32 %v45, 8
    %v47 = vadd.s32 %v45, 16
    %v48 = vadd.s32 %v45, 24
    %v49 = vadd.s32 %v45, 32
    %v50 = vadd.s32 %v45, 40
    %v51 = vadd.s32 %v45, 48
    %v52 = vadd.s32 %v45, 56
    %v53 = vadd.s32 %v45, 64
    %v54 = vadd.s32 %v45, 72
    %v55 = vadd.s32 %v45, 80
    %v56 = vadd.s32 %v45, 88
    %v57 = vadd.s32 %v45, 96
    %v58 = vadd.s32 %v45, 104
    %v59 = vadd.s32 %v45, 112
    %v60 = vadd.s32 %v45, 120
    %v61 = vlaneseq
    %v62 = vshrl.u32 %v61, 7
    %v63 = vsub.s32 0, %v62
    %v64 = vrot.slane %v43, %v63
    %vm65 = vcmp.eq.s32.totalorder %v45, %v64
    %vm66 = vcmp.eq.s32.totalorder %v46, %v64
    %vm67 = vcmp.eq.s32.totalorder %v47, %v64
    %vm68 = vcmp.eq.s32.totalorder %v48, %v64
    %vm69 = vcmp.eq.s32.totalorder %v49, %v64
    %vm70 = vcmp.eq.s32.totalorder %v50, %v64
    %vm71 = vcmp.eq.s32.totalorder %v51, %v64
    %vm72 = vcmp.eq.s32.totalorder %v52, %v64
    %vm73 = vcmp.eq.s32.totalorder %v53, %v64
    %vm74 = vcmp.eq.s32.totalorder %v54, %v64
    %vm75 = vcmp.eq.s32.totalorder %v55, %v64
    %vm76 = vcmp.eq.s32.totalorder %v56, %v64
    %vm77 = vcmp.eq.s32.totalorder %v57, %v64
    %vm78 = vcmp.eq.s32.totalorder %v58, %v64
    %vm79 = vcmp.eq.s32.totalorder %v59, %v64
    %vm80 = vcmp.eq.s32.totalorder %v60, %v64
    %v81 = vsel %vm65, 1, 0
    %v82 = vsel %vm66, 1, 0
    %v83 = vsel %vm67, 1, 0
    %v84 = vsel %vm68, 1, 0
    %v85 = vsel %vm69, 1, 0
    %v86 = vsel %vm70, 1, 0
    %v87 = vsel %vm71, 1, 0
    %v88 = vsel %vm72, 1, 0
    %v89 = vsel %vm73, 1, 0
    %v90 = vsel %vm74, 1, 0
    %v91 = vsel %vm75, 1, 0
    %v92 = vsel %vm76, 1, 0
    %v93 = vsel %vm77, 1, 0
    %v94 = vsel %vm78, 1, 0
    %v95 = vsel %vm79, 1, 0
    %v96 = vsel %vm80, 1, 0
    %v97 = vcvt.s32.f32 %v81
    %v98 = vcvt.s32.f32 %v82
    %v99 = vcvt.s32.f32 %v83
    %v100 = vcvt.s32.f32 %v84
    %v101 = vcvt.s32.f32 %v85
    %v102 = vcvt.s32.f32 %v86
    %v103 = vcvt.s32.f32 %v87
    %v104 = vcvt.s32.f32 %v88
    %v105 = vcvt.s32.f32 %v89
    %v106 = vcvt.s32.f32 %v90
    %v107 = vcvt.s32.f32 %v91
    %v108 = vcvt.s32.f32 %v92
    %v109 = vcvt.s32.f32 %v93
    %v110 = vcvt.s32.f32 %v94
    %v111 = vcvt.s32.f32 %v95
    %v112 = vcvt.s32.f32 %v96
    %113 = vmatprep.subr.mxu0 0.0
    %114 = vmatpush1.msra.mxu0 %v97
    %115 = vmatprep.subr.mxu0 0.0
    %116 = vmatpush1.msra.mxu0 %v98
    %117 = vmatprep.subr.mxu0 0.0
    %118 = vmatpush1.msra.mxu0 %v99
    %119 = vmatprep.subr.mxu0 0.0
    %120 = vmatpush1.msra.mxu0 %v100
    %121 = vmatprep.subr.mxu0 0.0
    %122 = vmatpush1.msra.mxu0 %v101
    %123 = vmatprep.subr.mxu0 0.0
    %124 = vmatpush1.msra.mxu0 %v102
    %125 = vmatprep.subr.mxu0 0.0
    %126 = vmatpush1.msra.mxu0 %v103
    %127 = vmatprep.subr.mxu0 0.0
    %128 = vmatpush1.msra.mxu0 %v104
    %129 = vmatprep.subr.mxu0 0.0
    %130 = vmatpush1.msra.mxu0 %v105
    %131 = vmatprep.subr.mxu0 0.0
    %132 = vmatpush1.msra.mxu0 %v106
    %133 = vmatprep.subr.mxu0 0.0
    %134 = vmatpush1.msra.mxu0 %v107
    %135 = vmatprep.subr.mxu0 0.0
    %136 = vmatpush1.msra.mxu0 %v108
    %137 = vmatprep.subr.mxu0 0.0
    %138 = vmatpush1.msra.mxu0 %v109
    %139 = vmatprep.subr.mxu0 0.0
    %140 = vmatpush1.msra.mxu0 %v110
    %141 = vmatprep.subr.mxu0 0.0
    %142 = vmatpush1.msra.mxu0 %v111
    %143 = vmatprep.subr.mxu0 0.0
    %144 = vmatpush1.msra.mxu0 %v112
    %145 = vmatprep.subr.mxu0 0.0
    %146 = vmatpush1.msra.mxu0 0.0
    %147 = vmatprep.subr.mxu0 0.0
    %148 = vmatpush1.msra.mxu0 0.0
    %149 = vmatprep.subr.mxu0 0.0
    %150 = vmatpush1.msra.mxu0 0.0
    %151 = vmatprep.subr.mxu0 0.0
    %152 = vmatpush1.msra.mxu0 0.0
    %153 = vmatprep.subr.mxu0 0.0
    %154 = vmatpush1.msra.mxu0 0.0
    %155 = vmatprep.subr.mxu0 0.0
    %156 = vmatpush1.msra.mxu0 0.0
    %157 = vmatprep.subr.mxu0 0.0
    %158 = vmatpush1.msra.mxu0 0.0
    %159 = vmatprep.subr.mxu0 0.0
    %160 = vmatpush1.msra.mxu0 0.0
    %161 = vmatprep.subr.mxu0 0.0
    %162 = vmatpush1.msra.mxu0 0.0
    %163 = vmatprep.subr.mxu0 0.0
    %164 = vmatpush1.msra.mxu0 0.0
    %165 = vmatprep.subr.mxu0 0.0
    %166 = vmatpush1.msra.mxu0 0.0
    %167 = vmatprep.subr.mxu0 0.0
    %168 = vmatpush1.msra.mxu0 0.0
    %169 = vmatprep.subr.mxu0 0.0
    %170 = vmatpush1.msra.mxu0 0.0
    %171 = vmatprep.subr.mxu0 0.0
    %172 = vmatpush1.msra.mxu0 0.0
    %173 = vmatprep.subr.mxu0 0.0
    %174 = vmatpush1.msra.mxu0 0.0
    %175 = vmatprep.subr.mxu0 0.0
    %176 = vmatpush1.msra.mxu0 0.0
    %177 = vmatprep.mubr.f32.mxu0 0.0
    %178 = vmatmul.mubr.f32.gmra.mrb[0].mxu0 %v40
    %v179 = vpop.f32.mrb[0].mxu0
    %v180 = vadd.f32 0.0, %v179
    %v181 = vpop.f32.mrb[0].mxu0
    %182 = vdwg.mxu0
    %p183 = scmp.eq.s32.totalorder 0, 0
    // Predicated region
    $region18: #{tpu_custom_call.1} parent=1 // pred_check
      %p184 = pneg %p183
    $region19: #{tpu_custom_call.1} parent=1 // pred_check_branch
      %186 = sbr.rel (%p184) target = $region21
    $region20: #{tpu_custom_call.1} parent=1 // pred_region
      %187 = vst [vmem:[#allocation7] sm:$0xff] %v180
    $region21: #{tpu_custom_call.1} parent=1 // pred_fallthru
      _
    %p188 = scmp.gt.s32.totalorder 0, 0
    // Predicated region
    $region22: #{tpu_custom_call.1} parent=1 // pred_check
      %p189 = pneg %p188
    $region23: #{tpu_custom_call.1} parent=1 // pred_check_branch
      %191 = sbr.rel (%p189) target = $region25
    $region24: #{tpu_custom_call.1} parent=1 // pred_region
      %v192 = vld [vmem:[#allocation7] sm:$0xff]
      %v193 = vadd.f32 %v192, %v180
      %194 = vst [vmem:[#allocation7] sm:$0xff] %v193
    $region25: #{tpu_custom_call.1} parent=1 // pred_fallthru
      _
    // Predicated region
    $region26: #{tpu_custom_call.1} parent=1 // pred_check
      _
    $region27: #{tpu_custom_call.1} parent=1 // pred_check_branch
      %196 = sbr.rel (0) target = $region29
    $region28: #{tpu_custom_call.1} parent=1 // pred_region
      %s198 = ssub.s32 128, 128
      %199 = vsyncadd [#allocation4], %s198
      %s201 = sshll.u32 [#allocation7], 4
      %s202 = int_to_ptr.vmem [resolvable:$true] %s201
      %204 = dma.vmem_to_hbm [thread:$0]  %s202, 128, %s2, [#allocation4]
    $region29: #{tpu_custom_call.1} parent=1 // pred_fallthru
      _
    // Predicated region
    $region30: #{tpu_custom_call.1} parent=1 // pred_check
      _
    $region31: #{tpu_custom_call.1} parent=1 // pred_check_branch
      %206 = sbr.rel (0) target = $region33
    $region32: #{tpu_custom_call.1} parent=1 // pred_region
      %207 = dma.done [#allocation4], 128
    $region33: #{tpu_custom_call.1} parent=1 // pred_fallthru
      _
    %208 = vsyncpa [#allocation3], 1
    %209 = vsyncpa [#allocation6], 1
    %210 = vsyncpa [#allocation4], 1

</llo_original>
